<compile_context>
chip_gen: v7x
topology: tpu7x:2x2x1
jax: 0.10.0
libtpu: 0.0.40
codegen_flags: <defaults>
</compile_context>

<pallas_src>
import jax
import jax.numpy as jnp
from jax.experimental import pallas as pl
from jax.experimental.pallas import tpu as pltpu


def _se_kernel(x_ref, w1t_ref, b1_ref, w2t_ref, b2_ref, o_ref):
    # x_ref: (Nb, C, HW) slab of Nb batch elements.
    x = x_ref[...]

    # adaptive_avg_pool2d(x, 1): mean over spatial (lane) dim, f32 accumulation
    # fused into the reduction (no named full-slab f32 temp).
    m = jnp.mean(x, axis=-1, dtype=jnp.float32)                    # (Nb, C)

    # se_reduce 1x1 conv == (Nb, C) @ (C, Cr) on the MXU.
    t1 = jnp.dot(m, w1t_ref[...], preferred_element_type=jnp.float32)
    t1 = t1 + b1_ref[...].astype(jnp.float32)                      # (Nb, Cr)
    s1 = jnp.maximum(t1, 0.0)                                      # ReLU

    # se_expand 1x1 conv == (Nb, Cr) @ (Cr, C) on the MXU.
    t2 = jnp.dot(s1, w2t_ref[...], preferred_element_type=jnp.float32)
    t2 = t2 + b2_ref[...].astype(jnp.float32)                      # (Nb, C)

    # Sigmoid gate (EUP) + channel-wise rescale while the slab is in VMEM.
    scale = jax.nn.sigmoid(t2).astype(x.dtype)                     # (Nb, C)
    o_ref[...] = (x * scale[:, :, None]).astype(o_ref.dtype)


def _pick_batch_block(n, per_item_bytes, target_bytes=2 << 20):
    """Largest Nb dividing n with Nb * per_item_bytes <= ~target (at least 1)."""
    nb = max(1, min(n, target_bytes // max(per_item_bytes, 1)))
    while n % nb:
        nb -= 1
    return nb


def se_module(x, w_reduce, b_reduce, w_expand, b_expand, *, donate_x=False):
    """Fused SE block. x: (N, C, H, W) NCHW.
    w_reduce: (Cr, C, 1, 1), b_reduce: (Cr,), w_expand: (C, Cr, 1, 1), b_expand: (C,).
    """
    N, C, H, W = x.shape
    Cr = w_reduce.shape[0]
    HW = H * W

    # Free reshapes / tiny-weight reshapes only — no full-tensor HBM copies.
    x3 = jnp.reshape(x, (N, C, HW))
    w1t = jnp.reshape(w_reduce, (Cr, C)).T          # (C, Cr)   (= W1^T)
    b1 = jnp.reshape(b_reduce, (1, Cr))
    w2t = jnp.reshape(w_expand, (C, Cr)).T          # (Cr, C)   (= W2^T)
    b2 = jnp.reshape(b_expand, (1, C))

    item_bytes = C * HW * x.dtype.itemsize
    Nb = _pick_batch_block(N, item_bytes)
    grid = (N // Nb,)

    # Explicit VMEM budget: in + out double-buffered slabs, f32 reduction temps,
    # weights, plus headroom.  Clamped to [16 MiB, 56 MiB] so it works under
    # v5e's small default and inside v7x's 64 MiB physical VMEM.
    slab_bytes = Nb * item_bytes
    vmem_budget = int(min(max(8 * slab_bytes + (4 << 20), 16 << 20), 56 << 20))

    out3 = pl.pallas_call(
        _se_kernel,
        out_shape=jax.ShapeDtypeStruct((N, C, HW), x.dtype),
        grid_spec=pltpu.PrefetchScalarGridSpec(
            num_scalar_prefetch=0,
            grid=grid,
            in_specs=[
                # Nb full (C, HW) activation slabs per grid step.
                pl.BlockSpec((Nb, C, HW), lambda i: (i, 0, 0)),
                # small SE weights/biases, same block every grid step
                pl.BlockSpec((C, Cr), lambda i: (0, 0)),
                pl.BlockSpec((1, Cr), lambda i: (0, 0)),
                pl.BlockSpec((Cr, C), lambda i: (0, 0)),
                pl.BlockSpec((1, C), lambda i: (0, 0)),
            ],
            out_specs=pl.BlockSpec((Nb, C, HW), lambda i: (i, 0, 0)),
        ),
        compiler_params=pltpu.CompilerParams(
            dimension_semantics=("parallel",),
            vmem_limit_bytes=vmem_budget),
        input_output_aliases=({0: 0} if donate_x else {}),
    )(x3, w1t, b1, w2t, b2)

    return jnp.reshape(out3, (N, C, H, W))


if __name__ == "__main__":
    key = jax.random.PRNGKey(0)
    kx, kw1, kb1, kw2, kb2 = jax.random.split(key, 5)

    N, C, H, W = 2, 8, 16, 16
    Cr = max(1, int(C * 0.25))

    x = jax.random.normal(kx, (N, C, H, W), dtype=jnp.float32)
    w_reduce = jax.random.normal(kw1, (Cr, C, 1, 1), dtype=jnp.float32) * 0.5
    b_reduce = jax.random.normal(kb1, (Cr,), dtype=jnp.float32) * 0.1
    w_expand = jax.random.normal(kw2, (C, Cr, 1, 1), dtype=jnp.float32) * 0.5
    b_expand = jax.random.normal(kb2, (C,), dtype=jnp.float32) * 0.1

    out = se_module(x, w_reduce, b_reduce, w_expand, b_expand)
    out = jax.block_until_ready(out)

    # pure-JAX reference of the PyTorch forward (plain sigmoid, no BN — matches spec)
    s = jnp.mean(x, axis=(2, 3), keepdims=True)                                # (N,C,1,1)
    s1 = jnp.einsum('rc,ncij->nrij', w_reduce.reshape(Cr, C), s) \
        + b_reduce.reshape(1, Cr, 1, 1)
    s1 = jnp.maximum(s1, 0.0)
    s2 = jnp.einsum('cr,nrij->ncij', w_expand.reshape(C, Cr), s1) \
        + b_expand.reshape(1, C, 1, 1)
    ref = x * jax.nn.sigmoid(s2)

    assert out.shape == x.shape and out.dtype == x.dtype
    assert jnp.allclose(out, ref, atol=1e-5, rtol=1e-5), "mismatch vs reference"
    print("KERNEL_OK")
</pallas_src>

<mosaic_0001>
module attributes {stable_mosaic.version = 11 : i64} {
  func.func @_se_kernel(%arg0: i32, %arg1: memref<2x8x256xf32, #tpu.memory_space<vmem>>, %arg2: memref<8x2xf32, #tpu.memory_space<vmem>>, %arg3: memref<1x2xf32, #tpu.memory_space<vmem>>, %arg4: memref<2x8xf32, #tpu.memory_space<vmem>>, %arg5: memref<1x8xf32, #tpu.memory_space<vmem>>, %arg6: memref<2x8x256xf32, #tpu.memory_space<vmem>>) attributes {dimension_semantics = [#tpu.dimension_semantics<parallel>], iteration_bounds = array<i64: 1>, scalar_prefetch = 0 : i64, scratch_operands = 0 : i64, tpu.core_type = #tpu.core_type<tc>, window_params = [{transform_indices = @transform_0, window_bounds = array<i64: 2, 8, 256>}, {pipeline_mode = #tpu.pipeline_mode<synchronous>, transform_indices = @transform_1, window_bounds = array<i64: 8, 2>}, {pipeline_mode = #tpu.pipeline_mode<synchronous>, transform_indices = @transform_2, window_bounds = array<i64: 1, 2>}, {pipeline_mode = #tpu.pipeline_mode<synchronous>, transform_indices = @transform_3, window_bounds = array<i64: 2, 8>}, {pipeline_mode = #tpu.pipeline_mode<synchronous>, transform_indices = @transform_4, window_bounds = array<i64: 1, 8>}, {transform_indices = @transform_5, window_bounds = array<i64: 2, 8, 256>}]} {
    %c0 = arith.constant 0 : index
    %c0_0 = arith.constant 0 : index
    %c0_1 = arith.constant 0 : index
    %0 = vector.load %arg1[%c0, %c0_0, %c0_1] : memref<2x8x256xf32, #tpu.memory_space<vmem>>, vector<2x8x256xf32>
    %cst = arith.constant dense<0.000000e+00> : vector<2x8xf32>
    %1 = vector.multi_reduction <add>, %0, %cst [2] : vector<2x8x256xf32> to vector<2x8xf32>
    %cst_2 = arith.constant 2.560000e+02 : f32
    %2 = vector.broadcast %cst_2 : f32 to vector<2x8xf32>
    %3 = arith.divf %1, %2 : vector<2x8xf32>
    %c0_3 = arith.constant 0 : index
    %c0_4 = arith.constant 0 : index
    %4 = vector.load %arg2[%c0_3, %c0_4] : memref<8x2xf32, #tpu.memory_space<vmem>>, vector<8x2xf32>
    %cst_5 = arith.constant dense<0.000000e+00> : vector<2x2xf32>
    %5 = tpu.matmul %3, %4, %cst_5 {dimension_numbers = #tpu.dot_dimension_numbers<[1], [0], [0], [1], [0, 0, 1, 1], [], []>} : vector<2x8xf32>, vector<8x2xf32>, vector<2x2xf32> -> vector<2x2xf32>
    %c0_6 = arith.constant 0 : index
    %c0_7 = arith.constant 0 : index
    %6 = vector.load %arg3[%c0_6, %c0_7] : memref<1x2xf32, #tpu.memory_space<vmem>>, vector<1x2xf32>
    %7 = vector.broadcast %6 : vector<1x2xf32> to vector<2x2xf32>
    %8 = arith.addf %5, %7 : vector<2x2xf32>
    %cst_8 = arith.constant 0.000000e+00 : f32
    %9 = vector.broadcast %cst_8 : f32 to vector<2x2xf32>
    %10 = arith.maximumf %8, %9 : vector<2x2xf32>
    %c0_9 = arith.constant 0 : index
    %c0_10 = arith.constant 0 : index
    %11 = vector.load %arg4[%c0_9, %c0_10] : memref<2x8xf32, #tpu.memory_space<vmem>>, vector<2x8xf32>
    %cst_11 = arith.constant dense<0.000000e+00> : vector<2x8xf32>
    %12 = tpu.matmul %10, %11, %cst_11 {dimension_numbers = #tpu.dot_dimension_numbers<[1], [0], [0], [1], [0, 0, 1, 1], [], []>} : vector<2x2xf32>, vector<2x8xf32>, vector<2x8xf32> -> vector<2x8xf32>
    %c0_12 = arith.constant 0 : index
    %c0_13 = arith.constant 0 : index
    %13 = vector.load %arg5[%c0_12, %c0_13] : memref<1x8xf32, #tpu.memory_space<vmem>>, vector<1x8xf32>
    %14 = vector.broadcast %13 : vector<1x8xf32> to vector<2x8xf32>
    %15 = arith.addf %12, %14 : vector<2x8xf32>
    %16 = arith.negf %15 : vector<2x8xf32>
    %17 = math.exp %16 : vector<2x8xf32>
    %cst_14 = arith.constant 1.000000e+00 : f32
    %18 = vector.broadcast %cst_14 : f32 to vector<2x8xf32>
    %19 = arith.addf %18, %17 : vector<2x8xf32>
    %20 = arith.divf %18, %19 : vector<2x8xf32>
    %21 = vector.shape_cast %20 : vector<2x8xf32> to vector<2x8x1xf32>
    %22 = vector.broadcast %21 : vector<2x8x1xf32> to vector<2x8x256xf32>
    %23 = arith.mulf %0, %22 : vector<2x8x256xf32>
    %c0_15 = arith.constant 0 : index
    %c0_16 = arith.constant 0 : index
    %c0_17 = arith.constant 0 : index
    %24 = vector.load %arg6[%c0_15, %c0_16, %c0_17] : memref<2x8x256xf32, #tpu.memory_space<vmem>>, vector<2x8x256xf32>
    tpu.vector_store %arg6[%c0_15, %c0_16, %c0_17], %23 {strides = array<i32>} : memref<2x8x256xf32, #tpu.memory_space<vmem>>, vector<2x8x256xf32>,
    return
  }
  func.func @transform_0(%arg0: i32) -> (i32, i32, i32) {
    %c0_i32 = arith.constant 0 : i32
    %c0_i32_0 = arith.constant 0 : i32
    %c0_i32_1 = arith.constant 0 : i32
    return %arg0, %c0_i32, %c0_i32_0 : i32, i32, i32
  }
  func.func @transform_1(%arg0: i32) -> (i32, i32) {
    %c0_i32 = arith.constant 0 : i32
    %c0_i32_0 = arith.constant 0 : i32
    %c0_i32_1 = arith.constant 0 : i32
    return %c0_i32, %c0_i32_0 : i32, i32
  }
  func.func @transform_2(%arg0: i32) -> (i32, i32) {
    %c0_i32 = arith.constant 0 : i32
    %c0_i32_0 = arith.constant 0 : i32
    %c0_i32_1 = arith.constant 0 : i32
    return %c0_i32, %c0_i32_0 : i32, i32
  }
  func.func @transform_3(%arg0: i32) -> (i32, i32) {
    %c0_i32 = arith.constant 0 : i32
    %c0_i32_0 = arith.constant 0 : i32
    %c0_i32_1 = arith.constant 0 : i32
    return %c0_i32, %c0_i32_0 : i32, i32
  }
  func.func @transform_4(%arg0: i32) -> (i32, i32) {
    %c0_i32 = arith.constant 0 : i32
    %c0_i32_0 = arith.constant 0 : i32
    %c0_i32_1 = arith.constant 0 : i32
    return %c0_i32, %c0_i32_0 : i32, i32
  }
  func.func @transform_5(%arg0: i32) -> (i32, i32, i32) {
    %c0_i32 = arith.constant 0 : i32
    %c0_i32_0 = arith.constant 0 : i32
    %c0_i32_1 = arith.constant 0 : i32
    return %arg0, %c0_i32, %c0_i32_0 : i32, i32, i32
  }
}

</mosaic_0001>

<llo_original>
// kernel: tpu_custom_call.1
$region0: #{tpu_custom_call.1}
  #allocation0 [shape = 'u32[]', space=smem, size = 0x4, offset = 0x4, fixed_abs, tag = 'smem constant byte address 0x4 - core index']
  #allocation1 [shape = 'u32[144,128]{1,0:T(1,128)}', space=vmem, size = 0x12000, scoped, tag = 'internal scratch']
  %s0 = inlined_call_operand.hbm [shape: f32[2,8,256], index: 0, kind: input, shape index: {}]
  %s1 = inlined_call_operand.vmem [shape: f32[8,2], index: 1, kind: input, shape index: {}]
  %s2 = inlined_call_operand.vmem [shape: f32[1,2], index: 2, kind: input, shape index: {}]
  %s3 = inlined_call_operand.vmem [shape: f32[2,8], index: 3, kind: input, shape index: {}]
  %s4 = inlined_call_operand.vmem [shape: f32[1,8], index: 4, kind: input, shape index: {}]
  %s5 = inlined_call_operand.hbm [shape: f32[2,8,256], index: 5, kind: output, shape index: {}]
  %s6 = sld [smem:[#allocation0]]
  $region34: #{tpu_custom_call.1} parent=0
    _
  %s8 = ssub.s32 1, %s6
  %s9 = scalar_select 0, %s8, %s6
  $region1: #{tpu_custom_call.1} parent=0
    #allocation2 [shape = 'u8[16384]{0}', space=vmem, size = 0x4000, scoped, tag = 'input window, operand 0, single buffered']
    #allocation3 [shape = 's32[1]{0}', space=sflag, size = 0x4, scoped, tag = 'scoped memory for tpu_custom_call.1']
    #allocation4 [shape = 's32[1]{0}', space=sflag, size = 0x4, scoped, tag = 'scoped memory for tpu_custom_call.1']
    #allocation5 [shape = 'u8[16384]{0}', space=vmem, size = 0x4000, scoped, tag = 'output window, operand 0, single buffered']
    %10 = vsyncpa [#allocation3], 0
    %11 = vsyncpa [#allocation4], 0
    // Predicated region
    $region2: #{tpu_custom_call.1} parent=1 // pred_check
      _
    $region3: #{tpu_custom_call.1} parent=1 // pred_check_branch
      %13 = sbr.rel (0) target = $region5
    $region4: #{tpu_custom_call.1} parent=1 // pred_region
      %s15 = ssub.s32 512, 512
      %16 = vsyncadd [#allocation3], %s15
      %s17 = sshll.u32 [#allocation2], 4
      %s18 = int_to_ptr.vmem [resolvable:$true] %s17
      %23 = dma.hbm_to_vmem [thread:$0]  %s0, 512, %s18, [#allocation3], 256, 256, 16
    $region5: #{tpu_custom_call.1} parent=1 // pred_fallthru
      _
    // Predicated region
    $region6: #{tpu_custom_call.1} parent=1 // pred_check
      _
    $region7: #{tpu_custom_call.1} parent=1 // pred_check_branch
      %25 = sbr.rel (0) target = $region9
    $region8: #{tpu_custom_call.1} parent=1 // pred_region
      _
    $region9: #{tpu_custom_call.1} parent=1 // pred_fallthru
      _
    // Predicated region
    $region10: #{tpu_custom_call.1} parent=1 // pred_check
      _
    $region11: #{tpu_custom_call.1} parent=1 // pred_check_branch
      %27 = sbr.rel (0) target = $region13
    $region12: #{tpu_custom_call.1} parent=1 // pred_region
      _
    $region13: #{tpu_custom_call.1} parent=1 // pred_fallthru
      _
    // Predicated region
    $region14: #{tpu_custom_call.1} parent=1 // pred_check
      _
    $region15: #{tpu_custom_call.1} parent=1 // pred_check_branch
      %29 = sbr.rel (0) target = $region17
    $region16: #{tpu_custom_call.1} parent=1 // pred_region
      _
    $region17: #{tpu_custom_call.1} parent=1 // pred_fallthru
      _
    // Predicated region
    $region18: #{tpu_custom_call.1} parent=1 // pred_check
      _
    $region19: #{tpu_custom_call.1} parent=1 // pred_check_branch
      %31 = sbr.rel (0) target = $region21
    $region20: #{tpu_custom_call.1} parent=1 // pred_region
      _
    $region21: #{tpu_custom_call.1} parent=1 // pred_fallthru
      _
    // Predicated region
    $region22: #{tpu_custom_call.1} parent=1 // pred_check
      _
    $region23: #{tpu_custom_call.1} parent=1 // pred_check_branch
      %33 = sbr.rel (0) target = $region25
    $region24: #{tpu_custom_call.1} parent=1 // pred_region
      %34 = dma.done [#allocation3], 512
    $region25: #{tpu_custom_call.1} parent=1 // pred_fallthru
      _
    %v35 = vld [vmem:[#allocation2] sm:$0xff]
    %v36 = vld [vmem:[#allocation2 + $0x8] sm:$0xff]
    %v37 = vld [vmem:[#allocation2 + $0x10] sm:$0xff]
    %v38 = vld [vmem:[#allocation2 + $0x18] sm:$0xff]
    %v39 = vadd.f32 %v35, %v36
    %40 = vadd.xlane.f32.xlu0 %v39
    %v41 = vpop.xlane.xlu0 %40
    %v42 = vadd.f32 %v37, %v38
    %43 = vadd.xlane.f32.xlu0 %v42
    %v44 = vpop.xlane.xlu0 %43
    %v45 = vrcp.pop 256.0
    %v46 = vmul.f32 %v41, %v45
    %v47 = vmul.f32 %v44, %v45
    %v48 = vld [vmem:[%s1] sm:$0xff]
    %v49 = vld [vmem:[%s2] sm:$0x1]
    %v51 = vlaneseq
    %v52 = vshrl.u32 %v51, 7
    %v53 = vsub.s32 0, %v52
    %v54 = vrot.slane %v49, %v53
    %v58 = vlaneseq
    %v59 = vand.u32 %v58, 127
    %v60 = vlaneseq
    %v61 = vshrl.u32 %v60, 7
    %v62 = vsub.s32 %v59, %v61
    %v63 = vrot.slane %v46, %v62
    %v64 = vlaneseq
    %v65 = vshrl.u32 %v64, 7
    %v66 = vsub.s32 %v59, %v65
    %v67 = vrot.slane %v47, %v66
    %vm68 = vcmask 1041409
    %v69 = vsel %vm68, %v67, %v63
    %vm70 = vcmask 64512
    %v71 = vsel %vm70, %v69, 0
    %73 = vmatprep.subr.mxu0 0.0
    %74 = vmatpush1.msra.mxu0 %v48
    %75 = vmatprep.subr.mxu0 0.0
    %76 = vmatpush1.msra.mxu0 0.0
    %77 = vmatprep.subr.mxu0 0.0
    %78 = vmatpush1.msra.mxu0 0.0
    %79 = vmatprep.subr.mxu0 0.0
    %80 = vmatpush1.msra.mxu0 0.0
    %81 = vmatprep.subr.mxu0 0.0
    %82 = vmatpush1.msra.mxu0 0.0
    %83 = vmatprep.subr.mxu0 0.0
    %84 = vmatpush1.msra.mxu0 0.0
    %85 = vmatprep.subr.mxu0 0.0
    %86 = vmatpush1.msra.mxu0 0.0
    %87 = vmatprep.subr.mxu0 0.0
    %88 = vmatpush1.msra.mxu0 0.0
    %89 = vmatprep.subr.mxu0 0.0
    %90 = vmatpush1.msra.mxu0 0.0
    %91 = vmatprep.subr.mxu0 0.0
    %92 = vmatpush1.msra.mxu0 0.0
    %93 = vmatprep.subr.mxu0 0.0
    %94 = vmatpush1.msra.mxu0 0.0
    %95 = vmatprep.subr.mxu0 0.0
    %96 = vmatpush1.msra.mxu0 0.0
    %97 = vmatprep.subr.mxu0 0.0
    %98 = vmatpush1.msra.mxu0 0.0
    %99 = vmatprep.subr.mxu0 0.0
    %100 = vmatpush1.msra.mxu0 0.0
    %101 = vmatprep.subr.mxu0 0.0
    %102 = vmatpush1.msra.mxu0 0.0
    %103 = vmatprep.subr.mxu0 0.0
    %104 = vmatpush1.msra.mxu0 0.0
    %105 = vmatprep.subr.mxu0 0.0
    %106 = vmatpush1.msra.mxu0 0.0
    %107 = vmatprep.subr.mxu0 0.0
    %108 = vmatpush1.msra.mxu0 0.0
    %109 = vmatprep.subr.mxu0 0.0
    %110 = vmatpush1.msra.mxu0 0.0
    %111 = vmatprep.subr.mxu0 0.0
    %112 = vmatpush1.msra.mxu0 0.0
    %113 = vmatprep.subr.mxu0 0.0
    %114 = vmatpush1.msra.mxu0 0.0
    %115 = vmatprep.subr.mxu0 0.0
    %116 = vmatpush1.msra.mxu0 0.0
    %117 = vmatprep.subr.mxu0 0.0
    %118 = vmatpush1.msra.mxu0 0.0
    %119 = vmatprep.subr.mxu0 0.0
    %120 = vmatpush1.msra.mxu0 0.0
    %121 = vmatprep.subr.mxu0 0.0
    %122 = vmatpush1.msra.mxu0 0.0
    %123 = vmatprep.subr.mxu0 0.0
    %124 = vmatpush1.msra.mxu0 0.0
    %125 = vmatprep.subr.mxu0 0.0
    %126 = vmatpush1.msra.mxu0 0.0
    %127 = vmatprep.subr.mxu0 0.0
    %128 = vmatpush1.msra.mxu0 0.0
    %129 = vmatprep.subr.mxu0 0.0
    %130 = vmatpush1.msra.mxu0 0.0
    %131 = vmatprep.subr.mxu0 0.0
    %132 = vmatpush1.msra.mxu0 0.0
    %133 = vmatprep.subr.mxu0 0.0
    %134 = vmatpush1.msra.mxu0 0.0
    %135 = vmatprep.subr.mxu0 0.0
    %136 = vmatpush1.msra.mxu0 0.0
    %137 = vmatprep.mubr.f32.mxu0 0.0
    %138 = vmatmul.mubr.f32.gmra.mrb[0].mxu0 %v71
    %v139 = vpop.f32.mrb[0].mxu0
    %v140 = vadd.f32 %v54, %v139
    %v141 = vpop.f32.mrb[0].mxu0
    %142 = vdwg.mxu0
    %v143 = vmax.f32 %v140, 0.0
    %v144 = vld [vmem:[%s3] sm:$0x3]
    %v145 = vld [vmem:[%s4] sm:$0x1]
    %v147 = vlaneseq
    %v148 = vshrl.u32 %v147, 7
    %v149 = vsub.s32 0, %v148
    %v150 = vrot.slane %v145, %v149
    %vm152 = vcmask 15360
    %v154 = vsel %vm152, %v143, 0
    %vm156 = vcmask 1041408
    %v158 = vsel %vm156, %v144, 0
    %160 = vmatprep.subr.mxu0 0.0
    %161 = vmatpush1.msra.mxu0 %v158
    %162 = vmatprep.subr.mxu0 0.0
    %163 = vmatpush1.msra.mxu0 0.0
    %164 = vmatprep.subr.mxu0 0.0
    %165 = vmatpush1.msra.mxu0 0.0
    %166 = vmatprep.subr.mxu0 0.0
    %167 = vmatpush1.msra.mxu0 0.0
    %168 = vmatprep.subr.mxu0 0.0
    %169 = vmatpush1.msra.mxu0 0.0
    %170 = vmatprep.subr.mxu0 0.0
    %171 = vmatpush1.msra.mxu0 0.0
    %172 = vmatprep.subr.mxu0 0.0
    %173 = vmatpush1.msra.mxu0 0.0
    %174 = vmatprep.subr.mxu0 0.0
    %175 = vmatpush1.msra.mxu0 0.0
    %176 = vmatprep.subr.mxu0 0.0
    %177 = vmatpush1.msra.mxu0 0.0
    %178 = vmatprep.subr.mxu0 0.0
    %179 = vmatpush1.msra.mxu0 0.0
    %180 = vmatprep.subr.mxu0 0.0
    %181 = vmatpush1.msra.mxu0 0.0
    %182 = vmatprep.subr.mxu0 0.0
    %183 = vmatpush1.msra.mxu0 0.0
    %184 = vmatprep.subr.mxu0 0.0
    %185 = vmatpush1.msra.mxu0 0.0
    %186 = vmatprep.subr.mxu0 0.0
    %187 = vmatpush1.msra.mxu0 0.0
    %188 = vmatprep.subr.mxu0 0.0
    %189 = vmatpush1.msra.mxu0 0.0
    %190 = vmatprep.subr.mxu0 0.0
    %191 = vmatpush1.msra.mxu0 0.0
    %192 = vmatprep.subr.mxu0 0.0
    %193 = vmatpush1.msra.mxu0 0.0
    %194 = vmatprep.subr.mxu0 0.0
    %195 = vmatpush1.msra.mxu0 0.0
    %196 = vmatprep.subr.mxu0 0.0
    %197 = vmatpush1.msra.mxu0 0.0
    %198 = vmatprep.subr.mxu0 0.0
    %199 = vmatpush1.msra.mxu0 0.0
    %200 = vmatprep.subr.mxu0 0.0
    %201 = vmatpush1.msra.mxu0 0.0
    %202 = vmatprep.subr.mxu0 0.0
    %203 = vmatpush1.msra.mxu0 0.0
    %204 = vmatprep.subr.mxu0 0.0
    %205 = vmatpush1.msra.mxu0 0.0
    %206 = vmatprep.subr.mxu0 0.0
    %207 = vmatpush1.msra.mxu0 0.0
    %208 = vmatprep.subr.mxu0 0.0
    %209 = vmatpush1.msra.mxu0 0.0
    %210 = vmatprep.subr.mxu0 0.0
    %211 = vmatpush1.msra.mxu0 0.0
    %212 = vmatprep.subr.mxu0 0.0
    %213 = vmatpush1.msra.mxu0 0.0
    %214 = vmatprep.subr.mxu0 0.0
    %215 = vmatpush1.msra.mxu0 0.0
    %216 = vmatprep.subr.mxu0 0.0
    %217 = vmatpush1.msra.mxu0 0.0
    %218 = vmatprep.subr.mxu0 0.0
    %219 = vmatpush1.msra.mxu0 0.0
    %220 = vmatprep.subr.mxu0 0.0
    %221 = vmatpush1.msra.mxu0 0.0
    %222 = vmatprep.subr.mxu0 0.0
    %223 = vmatpush1.msra.mxu0 0.0
    %224 = vmatprep.mubr.f32.mxu0 0.0
    %225 = vmatmul.mubr.f32.gmra.mrb[0].mxu0 %v154
    %v226 = vpop.f32.mrb[0].mxu0
    %v227 = vadd.f32 %v150, %v226
    %v228 = vpop.f32.mrb[0].mxu0
    %229 = vdwg.mxu0
    %v230 = vxor.u32 %v227, 2147483648
    %v231 = vmul.f32 %v230, 1.442695
    %v232 = vpow.pop %v231
    %v233 = vadd.f32 %v232, 1.0
    %v234 = vrcp.pop %v233
    %v235 = vmul.f32 1.0, %v234
    %v236 = vlaneseq
    %v237 = vshrl.u32 %v236, 7
    %v238 = vsub.s32 0, %v237
    %v239 = vrot.slane %v235, %v238
    %241 = vbcast.lane.b32.xlu0 %v239, 256
    %v242 = vpop.permute.xlu0 %241
    %v243 = vlaneseq
    %v244 = vshrl.u32 %v243, 7
    %v245 = vsub.s32 1, %v244
    %v246 = vrot.slane %v235, %v245
    %248 = vbcast.lane.b32.xlu0 %v246, 256
    %v249 = vpop.permute.xlu0 %248
    %v250 = vmul.f32 %v35, %v242
    %v251 = vmul.f32 %v36, %v242
    %v252 = vmul.f32 %v37, %v249
    %v253 = vmul.f32 %v38, %v249
    %254 = vst [vmem:[#allocation5] sm:$0xff] %v250
    %255 = vst [vmem:[#allocation5 + $0x8] sm:$0xff] %v251
    %256 = vst [vmem:[#allocation5 + $0x10] sm:$0xff] %v252
    %257 = vst [vmem:[#allocation5 + $0x18] sm:$0xff] %v253
    // Predicated region
    $region26: #{tpu_custom_call.1} parent=1 // pred_check
      _
    $region27: #{tpu_custom_call.1} parent=1 // pred_check_branch
      %259 = sbr.rel (0) target = $region29
    $region28: #{tpu_custom_call.1} parent=1 // pred_region
      %s261 = ssub.s32 512, 512
      %262 = vsyncadd [#allocation4], %s261
      %s263 = sshll.u32 [#allocation5], 4
      %s264 = int_to_ptr.vmem [resolvable:$true] %s263
      %269 = dma.vmem_to_hbm [thread:$0]  %s264, 512, %s5, [#allocation4], 256, 256, 16
    $region29: #{tpu_custom_call.1} parent=1 // pred_fallthru
      _
    // Predicated region
    $region30: #{tpu_custom_call.1} parent=1 // pred_check
      _
    $region31: #{tpu_custom_call.1} parent=1 // pred_check_branch
      %271 = sbr.rel (0) target = $region33
    $region32: #{tpu_custom_call.1} parent=1 // pred_region
      %272 = dma.done [#allocation4], 512
    $region33: #{tpu_custom_call.1} parent=1 // pred_fallthru
      _
    %273 = vsyncpa [#allocation3], 1
    %274 = vsyncpa [#allocation4], 1

</llo_original>
